<compile_context>
chip_gen: v5e
topology: v5e:2x2
jax: 0.10.0
libtpu: 0.0.40
codegen_flags: <defaults>
</compile_context>

<pallas_src>
import jax
import jax.numpy as jnp
import numpy as np
from jax.experimental import pallas as pl
from jax.experimental.pallas import tpu as pltpu


def _edge_kernel(x_ref, o_ref, pad_ref):
    """One batch tile (bn images) per grid step.

    x_ref   : (bn, C, H, W)        input block (C is 1 or 3)
    o_ref   : (bn, 1, H, W)        output block
    pad_ref : (bn, H+2, W+2) f32   VMEM scratch holding zero-padded images
    """
    bn, c, h, w = x_ref.shape

    # Single full-block load; fused channel mean + cast to f32 in registers.
    x = x_ref[...].astype(jnp.float32)
    if c == 3:
        img = (x[:, 0] + x[:, 1] + x[:, 2]) * jnp.float32(1.0 / 3.0)
    else:
        img = x[:, 0]

    # Zero-padded images (the conv's padding=1).  Re-zero every step: with
    # "parallel" megacore sharding each core starts at a different grid index,
    # so a zero-only-at-step-0 pattern would leave stale borders on core 1.
    pad_ref[...] = jnp.zeros_like(pad_ref)
    pad_ref[:, pl.ds(1, h), pl.ds(1, w)] = img

    # 9-point stencil via shifted (bn, H, W) windows of the padded scratch.
    tl = pad_ref[:, pl.ds(0, h), pl.ds(0, w)]   # img[i-1, j-1]
    tc = pad_ref[:, pl.ds(0, h), pl.ds(1, w)]   # img[i-1, j  ]
    tr = pad_ref[:, pl.ds(0, h), pl.ds(2, w)]   # img[i-1, j+1]
    ml = pad_ref[:, pl.ds(1, h), pl.ds(0, w)]   # img[i  , j-1]
    mr = pad_ref[:, pl.ds(1, h), pl.ds(2, w)]   # img[i  , j+1]
    bl = pad_ref[:, pl.ds(2, h), pl.ds(0, w)]   # img[i+1, j-1]
    bc = pad_ref[:, pl.ds(2, h), pl.ds(1, w)]   # img[i+1, j  ]
    br = pad_ref[:, pl.ds(2, h), pl.ds(2, w)]   # img[i+1, j+1]

    # sobel_x = [[-1,0,1],[-2,0,2],[-1,0,1]]
    # sobel_y = [[-1,-2,-1],[0,0,0],[1,2,1]]      (PyTorch conv = cross-corr)
    edge_x = (tr - tl) + 2.0 * (mr - ml) + (br - bl)
    edge_y = (bl - tl) + 2.0 * (bc - tc) + (br - tr)

    mag = jnp.sqrt(edge_x * edge_x + edge_y * edge_y)
    o_ref[...] = mag[:, None].astype(o_ref.dtype)   # (bn, 1, H, W)


def _pick_batch_tile(n, c, h, w, in_itemsize, budget_bytes):
    """Largest divisor of n whose per-block VMEM footprint fits the budget."""
    per_img = ((c * h * w * in_itemsize + h * w * 4) * 2      # double-buffered in/out
               + (h + 2) * (w + 2) * 4)                        # pad scratch
    max_bn = max(1, budget_bytes // per_img)
    bn = 1
    for d in range(1, n + 1):
        if n % d == 0 and d <= max_bn:
            bn = d
    return bn


def edge_detection_layer1(x):
    """JAX/Pallas equivalent of EdgeDetectionLayer1.forward.

    x : (N, C, H, W) with C in {1, 3}. Returns (N, 1, H, W) float32.
    """
    n, c, h, w = x.shape
    assert c in (1, 3), "module expects a 1-channel input (or 3 -> channel mean)"

    bn = _pick_batch_tile(n, c, h, w, jnp.dtype(x.dtype).itemsize,
                          budget_bytes=32 << 20)

    # TODO(synk): for very large single images (per-image block > ~16 MiB) add a
    # second grid axis over row blocks with a 1-row halo instead of whole-image
    # blocks; whole-image blocks are the right tile for typical sizes here.
    return pl.pallas_call(
        _edge_kernel,
        out_shape=jax.ShapeDtypeStruct((n, 1, h, w), jnp.float32),
        grid_spec=pltpu.PrefetchScalarGridSpec(
            num_scalar_prefetch=0,
            grid=(n // bn,),
            in_specs=[pl.BlockSpec((bn, c, h, w), lambda b: (b, 0, 0, 0))],
            out_specs=pl.BlockSpec((bn, 1, h, w), lambda b: (b, 0, 0, 0)),
            scratch_shapes=[pltpu.VMEM((bn, h + 2, w + 2), jnp.float32)],
        ),
        compiler_params=pltpu.CompilerParams(
            dimension_semantics=("parallel",),   # megacore-shard the batch axis
            vmem_limit_bytes=48 << 20,           # safe on v7x (64 MiB physical)
        ),
    )(x)


def _edge_ref(x):
    """Pure-JAX reference mirroring the PyTorch module."""
    x = x.astype(jnp.float32)
    if x.shape[1] == 3:
        x = jnp.mean(x, axis=1, keepdims=True)
    kx = jnp.array([[-1.0, 0.0, 1.0], [-2.0, 0.0, 2.0], [-1.0, 0.0, 1.0]],
                   dtype=jnp.float32).reshape(1, 1, 3, 3)
    ky = jnp.array([[-1.0, -2.0, -1.0], [0.0, 0.0, 0.0], [1.0, 2.0, 1.0]],
                   dtype=jnp.float32).reshape(1, 1, 3, 3)
    dn = ("NCHW", "OIHW", "NCHW")
    ex = jax.lax.conv_general_dilated(x, kx, (1, 1), ((1, 1), (1, 1)),
                                      dimension_numbers=dn,
                                      precision=jax.lax.Precision.HIGHEST)
    ey = jax.lax.conv_general_dilated(x, ky, (1, 1), ((1, 1), (1, 1)),
                                      dimension_numbers=dn,
                                      precision=jax.lax.Precision.HIGHEST)
    return jnp.sqrt(ex * ex + ey * ey)


if __name__ == "__main__":
    key = jax.random.PRNGKey(0)
    k1, k2 = jax.random.split(key)

    # 3-channel input exercises the fused channel-mean path.
    x3 = jax.random.normal(k1, (2, 3, 16, 16), dtype=jnp.float32)
    out3 = jax.block_until_ready(edge_detection_layer1(x3))
    ref3 = jax.block_until_ready(_edge_ref(x3))
    np.testing.assert_allclose(np.asarray(out3), np.asarray(ref3),
                               rtol=1e-5, atol=1e-4)

    # 1-channel input (no mean).
    x1 = jax.random.normal(k2, (2, 1, 16, 16), dtype=jnp.float32)
    out1 = jax.block_until_ready(edge_detection_layer1(x1))
    ref1 = jax.block_until_ready(_edge_ref(x1))
    np.testing.assert_allclose(np.asarray(out1), np.asarray(ref1),
                               rtol=1e-5, atol=1e-4)

    print("KERNEL_OK")
</pallas_src>

<mosaic_0001>
module attributes {stable_mosaic.version = 11 : i64} {
  func.func @_edge_kernel(%arg0: i32, %arg1: memref<2x3x16x16xf32, #tpu.memory_space<vmem>>, %arg2: memref<2x1x16x16xf32, #tpu.memory_space<vmem>>, %arg3: memref<2x18x18xf32, #tpu.memory_space<vmem>>) attributes {dimension_semantics = [#tpu.dimension_semantics<parallel>], iteration_bounds = array<i64: 1>, scalar_prefetch = 0 : i64, scratch_operands = 1 : i64, tpu.core_type = #tpu.core_type<tc>, window_params = [{transform_indices = @transform_0, window_bounds = array<i64: 2, 3, 16, 16>}, {transform_indices = @transform_1, window_bounds = array<i64: 2, 1, 16, 16>}]} {
    %c0 = arith.constant 0 : index
    %c0_0 = arith.constant 0 : index
    %c0_1 = arith.constant 0 : index
    %c0_2 = arith.constant 0 : index
    %0 = vector.load %arg1[%c0, %c0_0, %c0_1, %c0_2] : memref<2x3x16x16xf32, #tpu.memory_space<vmem>>, vector<2x3x16x16xf32>
    %1 = vector.extract_strided_slice %0 {offsets = [0, 0, 0, 0], sizes = [2, 1, 16, 16], strides = [1, 1, 1, 1]} : vector<2x3x16x16xf32> to vector<2x1x16x16xf32>
    %2 = vector.shape_cast %1 : vector<2x1x16x16xf32> to vector<2x16x16xf32>
    %3 = vector.extract_strided_slice %0 {offsets = [0, 1, 0, 0], sizes = [2, 1, 16, 16], strides = [1, 1, 1, 1]} : vector<2x3x16x16xf32> to vector<2x1x16x16xf32>
    %4 = vector.shape_cast %3 : vector<2x1x16x16xf32> to vector<2x16x16xf32>
    %5 = arith.addf %2, %4 : vector<2x16x16xf32>
    %6 = vector.extract_strided_slice %0 {offsets = [0, 2, 0, 0], sizes = [2, 1, 16, 16], strides = [1, 1, 1, 1]} : vector<2x3x16x16xf32> to vector<2x1x16x16xf32>
    %7 = vector.shape_cast %6 : vector<2x1x16x16xf32> to vector<2x16x16xf32>
    %8 = arith.addf %5, %7 : vector<2x16x16xf32>
    %cst = arith.constant 0.333333343 : f32
    %9 = vector.broadcast %cst : f32 to vector<2x16x16xf32>
    %10 = arith.mulf %8, %9 : vector<2x16x16xf32>
    %cst_3 = arith.constant 0.000000e+00 : f32
    %11 = vector.broadcast %cst_3 : f32 to vector<2x18x18xf32>
    %c0_4 = arith.constant 0 : index
    %c0_5 = arith.constant 0 : index
    %c0_6 = arith.constant 0 : index
    %12 = vector.load %arg3[%c0_4, %c0_5, %c0_6] : memref<2x18x18xf32, #tpu.memory_space<vmem>>, vector<2x18x18xf32>
    tpu.vector_store %arg3[%c0_4, %c0_5, %c0_6], %11 {strides = array<i32>} : memref<2x18x18xf32, #tpu.memory_space<vmem>>, vector<2x18x18xf32>,
    %c0_7 = arith.constant 0 : index
    %c1 = arith.constant 1 : index
    %c1_8 = arith.constant 1 : index
    %13 = vector.load %arg3[%c0_7, %c1, %c1_8] : memref<2x18x18xf32, #tpu.memory_space<vmem>>, vector<2x16x16xf32>
    tpu.vector_store %arg3[%c0_7, %c1, %c1_8], %10 {strides = array<i32>} : memref<2x18x18xf32, #tpu.memory_space<vmem>>, vector<2x16x16xf32>,
    %c0_9 = arith.constant 0 : index
    %c0_10 = arith.constant 0 : index
    %c0_11 = arith.constant 0 : index
    %14 = vector.load %arg3[%c0_9, %c0_10, %c0_11] : memref<2x18x18xf32, #tpu.memory_space<vmem>>, vector<2x16x16xf32>
    %c0_12 = arith.constant 0 : index
    %c0_13 = arith.constant 0 : index
    %c1_14 = arith.constant 1 : index
    %15 = vector.load %arg3[%c0_12, %c0_13, %c1_14] : memref<2x18x18xf32, #tpu.memory_space<vmem>>, vector<2x16x16xf32>
    %c0_15 = arith.constant 0 : index
    %c0_16 = arith.constant 0 : index
    %c2 = arith.constant 2 : index
    %16 = vector.load %arg3[%c0_15, %c0_16, %c2] : memref<2x18x18xf32, #tpu.memory_space<vmem>>, vector<2x16x16xf32>
    %c0_17 = arith.constant 0 : index
    %c1_18 = arith.constant 1 : index
    %c0_19 = arith.constant 0 : index
    %17 = vector.load %arg3[%c0_17, %c1_18, %c0_19] : memref<2x18x18xf32, #tpu.memory_space<vmem>>, vector<2x16x16xf32>
    %c0_20 = arith.constant 0 : index
    %c1_21 = arith.constant 1 : index
    %c2_22 = arith.constant 2 : index
    %18 = vector.load %arg3[%c0_20, %c1_21, %c2_22] : memref<2x18x18xf32, #tpu.memory_space<vmem>>, vector<2x16x16xf32>
    %c0_23 = arith.constant 0 : index
    %c2_24 = arith.constant 2 : index
    %c0_25 = arith.constant 0 : index
    %19 = vector.load %arg3[%c0_23, %c2_24, %c0_25] : memref<2x18x18xf32, #tpu.memory_space<vmem>>, vector<2x16x16xf32>
    %c0_26 = arith.constant 0 : index
    %c2_27 = arith.constant 2 : index
    %c1_28 = arith.constant 1 : index
    %20 = vector.load %arg3[%c0_26, %c2_27, %c1_28] : memref<2x18x18xf32, #tpu.memory_space<vmem>>, vector<2x16x16xf32>
    %c0_29 = arith.constant 0 : index
    %c2_30 = arith.constant 2 : index
    %c2_31 = arith.constant 2 : index
    %21 = vector.load %arg3[%c0_29, %c2_30, %c2_31] : memref<2x18x18xf32, #tpu.memory_space<vmem>>, vector<2x16x16xf32>
    %22 = arith.subf %16, %14 : vector<2x16x16xf32>
    %23 = arith.subf %18, %17 : vector<2x16x16xf32>
    %cst_32 = arith.constant 2.000000e+00 : f32
    %24 = vector.broadcast %cst_32 : f32 to vector<2x16x16xf32>
    %25 = arith.mulf %24, %23 : vector<2x16x16xf32>
    %26 = arith.addf %22, %25 : vector<2x16x16xf32>
    %27 = arith.subf %21, %19 : vector<2x16x16xf32>
    %28 = arith.addf %26, %27 : vector<2x16x16xf32>
    %29 = arith.subf %19, %14 : vector<2x16x16xf32>
    %30 = arith.subf %20, %15 : vector<2x16x16xf32>
    %cst_33 = arith.constant 2.000000e+00 : f32
    %31 = vector.broadcast %cst_33 : f32 to vector<2x16x16xf32>
    %32 = arith.mulf %31, %30 : vector<2x16x16xf32>
    %33 = arith.addf %29, %32 : vector<2x16x16xf32>
    %34 = arith.subf %21, %16 : vector<2x16x16xf32>
    %35 = arith.addf %33, %34 : vector<2x16x16xf32>
    %36 = arith.mulf %28, %28 : vector<2x16x16xf32>
    %37 = arith.mulf %35, %35 : vector<2x16x16xf32>
    %38 = arith.addf %36, %37 : vector<2x16x16xf32>
    %39 = math.sqrt %38 : vector<2x16x16xf32>
    %40 = vector.shape_cast %39 : vector<2x16x16xf32> to vector<2x1x16x16xf32>
    %c0_34 = arith.constant 0 : index
    %c0_35 = arith.constant 0 : index
    %c0_36 = arith.constant 0 : index
    %c0_37 = arith.constant 0 : index
    %41 = vector.load %arg2[%c0_34, %c0_35, %c0_36, %c0_37] : memref<2x1x16x16xf32, #tpu.memory_space<vmem>>, vector<2x1x16x16xf32>
    tpu.vector_store %arg2[%c0_34, %c0_35, %c0_36, %c0_37], %40 {strides = array<i32>} : memref<2x1x16x16xf32, #tpu.memory_space<vmem>>, vector<2x1x16x16xf32>,
    return
  }
  func.func @transform_0(%arg0: i32) -> (i32, i32, i32, i32) {
    %c0_i32 = arith.constant 0 : i32
    %c0_i32_0 = arith.constant 0 : i32
    %c0_i32_1 = arith.constant 0 : i32
    %c0_i32_2 = arith.constant 0 : i32
    return %arg0, %c0_i32, %c0_i32_0, %c0_i32_1 : i32, i32, i32, i32
  }
  func.func @transform_1(%arg0: i32) -> (i32, i32, i32, i32) {
    %c0_i32 = arith.constant 0 : i32
    %c0_i32_0 = arith.constant 0 : i32
    %c0_i32_1 = arith.constant 0 : i32
    %c0_i32_2 = arith.constant 0 : i32
    return %arg0, %c0_i32, %c0_i32_0, %c0_i32_1 : i32, i32, i32, i32
  }
}

</mosaic_0001>

<llo_original>
// kernel: tpu_custom_call.1
$region0: #{tpu_custom_call.1}
  #allocation0 [shape = 'u32[]', space=smem, size = 0x4, offset = 0x4, fixed_abs, tag = 'smem constant byte address 0x4 - core index']
  #allocation1 [shape = 'u32[72,128]{1,0:T(1,128)}', space=vmem, size = 0x9000, scoped, tag = 'internal scratch']
  #allocation2 [shape = 'f32[2,18,18]{2,1,0:T(8,128)}', space=vmem, size = 0x6000, scoped, tag = 'scratch operand']
  %s0 = inlined_call_operand.hbm [shape: f32[2,3,16,16], index: 0, kind: input, shape index: {}]
  %s1 = inlined_call_operand.hbm [shape: f32[2,1,16,16], index: 1, kind: output, shape index: {}]
  %s2 = sld [smem:[#allocation0]]
  $region18: #{tpu_custom_call.1} parent=0
    _
  %s4 = ssub.s32 1, %s2
  %s5 = scalar_select 0, %s4, %s2
  $region1: #{tpu_custom_call.1} parent=0
    #allocation3 [shape = 'u8[49152]{0}', space=vmem, size = 0xc000, scoped, tag = 'input window, operand 0, single buffered']
    #allocation4 [shape = 's32[1]{0}', space=sflag, size = 0x4, scoped, tag = 'scoped memory for tpu_custom_call.1']
    #allocation5 [shape = 's32[1]{0}', space=sflag, size = 0x4, scoped, tag = 'scoped memory for tpu_custom_call.1']
    #allocation6 [shape = 'u8[16384]{0}', space=vmem, size = 0x4000, scoped, tag = 'output window, operand 0, single buffered']
    %6 = vsyncpa [#allocation4], 0
    %7 = vsyncpa [#allocation5], 0
    // Predicated region
    $region2: #{tpu_custom_call.1} parent=1 // pred_check
      _
    $region3: #{tpu_custom_call.1} parent=1 // pred_check_branch
      %9 = sbr.rel (0) target = $region5
    $region4: #{tpu_custom_call.1} parent=1 // pred_region
      %11 = vsyncadd [#allocation4], 0
      %s12 = sshll.u32 %s0, 4
      %s13 = int_to_ptr.hbm [resolvable:$true] %s12
      %s14 = sshll.u32 [#allocation3], 4
      %s15 = int_to_ptr.vmem [resolvable:$true] %s14
      %20 = dma.hbm_to_vmem [thread:$0]  %s13, 1536, %s15, [#allocation4], 128, 128, 8
    $region5: #{tpu_custom_call.1} parent=1 // pred_fallthru
      _
    // Predicated region
    $region6: #{tpu_custom_call.1} parent=1 // pred_check
      _
    $region7: #{tpu_custom_call.1} parent=1 // pred_check_branch
      %22 = sbr.rel (0) target = $region9
    $region8: #{tpu_custom_call.1} parent=1 // pred_region
      %24 = dma.done [#allocation4], 1536
    $region9: #{tpu_custom_call.1} parent=1 // pred_fallthru
      _
    %v25 = vld [vmem:[#allocation3] sm:$0xff]
    %v26 = vld [vmem:[#allocation3 + $0x8] sm:$0xff]
    %v27 = vld [vmem:[#allocation3 + $0x10] sm:$0xff]
    %v28 = vld [vmem:[#allocation3 + $0x18] sm:$0xff]
    %v29 = vld [vmem:[#allocation3 + $0x20] sm:$0xff]
    %v30 = vld [vmem:[#allocation3 + $0x28] sm:$0xff]
    %v31 = vld [vmem:[#allocation3 + $0x30] sm:$0xff]
    %v32 = vld [vmem:[#allocation3 + $0x38] sm:$0xff]
    %v33 = vld [vmem:[#allocation3 + $0x40] sm:$0xff]
    %v34 = vld [vmem:[#allocation3 + $0x48] sm:$0xff]
    %v35 = vld [vmem:[#allocation3 + $0x50] sm:$0xff]
    %v36 = vld [vmem:[#allocation3 + $0x58] sm:$0xff]
    %v37 = vadd.f32 %v25, %v27
    %v38 = vadd.f32 %v26, %v28
    %v39 = vadd.f32 %v31, %v33
    %v40 = vadd.f32 %v32, %v34
    %v41 = vadd.f32 %v37, %v29
    %v42 = vadd.f32 %v38, %v30
    %v43 = vadd.f32 %v39, %v35
    %v44 = vadd.f32 %v40, %v36
    %v45 = vmul.f32 %v41, 0.33333334
    %v46 = vmul.f32 %v42, 0.33333334
    %v47 = vmul.f32 %v43, 0.33333334
    %v48 = vmul.f32 %v44, 0.33333334
    %vm49 = vcmask 146432
    %50 = vst.msk [vmem:[#allocation2] sm:$0xff] %vm49, 0.0
    %51 = vst.msk [vmem:[#allocation2 + $0x8] sm:$0xff] %vm49, 0.0
    %vm52 = vcmask 140288
    %53 = vst.msk [vmem:[#allocation2 + $0x10] sm:$0x3] %vm52, 0.0
    %54 = vst.msk [vmem:[#allocation2 + $0x18] sm:$0xff] %vm49, 0.0
    %55 = vst.msk [vmem:[#allocation2 + $0x20] sm:$0xff] %vm49, 0.0
    %56 = vst.msk [vmem:[#allocation2 + $0x28] sm:$0x3] %vm52, 0.0
    %61 = vrot.lane.b32.xlu0 %v45, 1
    %v62 = vpop.permute.xlu0 %61
    %63 = vrot.lane.b32.xlu0 %v46, 1
    %v64 = vpop.permute.xlu0 %63
    %65 = vrot.lane.b32.xlu0 %v47, 1
    %v66 = vpop.permute.xlu0 %65
    %67 = vrot.lane.b32.xlu0 %v48, 1
    %v68 = vpop.permute.xlu0 %67
    %vm73 = vcmask 138248
    %74 = vst.msk [vmem:[#allocation2 + $0x1] sm:$0xff] %vm73, %v62
    %75 = vst.msk [vmem:[#allocation2 + $0x9] sm:$0xff] %vm73, %v64
    %76 = vst.msk [vmem:[#allocation2 + $0x19] sm:$0xff] %vm73, %v66
    %77 = vst.msk [vmem:[#allocation2 + $0x21] sm:$0xff] %vm73, %v68
    %v78 = vld [vmem:[#allocation2] sm:$0xff]
    %v79 = vld [vmem:[#allocation2 + $0x8] sm:$0xff]
    %v80 = vld [vmem:[#allocation2 + $0x18] sm:$0xff]
    %v81 = vld [vmem:[#allocation2 + $0x20] sm:$0xff]
    %v82 = vld [vmem:[#allocation2 + $0x1] sm:$0xff]
    %v83 = vld [vmem:[#allocation2 + $0x9] sm:$0xff]
    %v84 = vld [vmem:[#allocation2 + $0x19] sm:$0xff]
    %v85 = vld [vmem:[#allocation2 + $0x21] sm:$0xff]
    %v86 = vld [vmem:[#allocation2 + $0x2] sm:$0xff]
    %v87 = vld [vmem:[#allocation2 + $0xa] sm:$0xff]
    %v88 = vld [vmem:[#allocation2 + $0x1a] sm:$0xff]
    %v89 = vld [vmem:[#allocation2 + $0x22] sm:$0xff]
    %94 = vrot.lane.b32.xlu0 %v78, 2
    %v95 = vpop.permute.xlu0 %94
    %96 = vrot.lane.b32.xlu0 %v79, 2
    %v97 = vpop.permute.xlu0 %96
    %98 = vrot.lane.b32.xlu0 %v80, 2
    %v99 = vpop.permute.xlu0 %98
    %100 = vrot.lane.b32.xlu0 %v81, 2
    %v101 = vpop.permute.xlu0 %100
    %v106 = vsub.f32 %v78, %v95
    %v107 = vsub.f32 %v79, %v97
    %v108 = vsub.f32 %v80, %v99
    %v109 = vsub.f32 %v81, %v101
    %114 = vrot.lane.b32.xlu0 %v82, 2
    %v115 = vpop.permute.xlu0 %114
    %116 = vrot.lane.b32.xlu0 %v83, 2
    %v117 = vpop.permute.xlu0 %116
    %118 = vrot.lane.b32.xlu0 %v84, 2
    %v119 = vpop.permute.xlu0 %118
    %120 = vrot.lane.b32.xlu0 %v85, 2
    %v121 = vpop.permute.xlu0 %120
    %v126 = vsub.f32 %v82, %v115
    %v127 = vsub.f32 %v83, %v117
    %v128 = vsub.f32 %v84, %v119
    %v129 = vsub.f32 %v85, %v121
    %v130 = vmul.f32 %v126, 2.0
    %v131 = vmul.f32 %v127, 2.0
    %v132 = vmul.f32 %v128, 2.0
    %v133 = vmul.f32 %v129, 2.0
    %v134 = vadd.f32 %v106, %v130
    %v135 = vadd.f32 %v107, %v131
    %v136 = vadd.f32 %v108, %v132
    %v137 = vadd.f32 %v109, %v133
    %142 = vrot.lane.b32.xlu0 %v86, 2
    %v143 = vpop.permute.xlu0 %142
    %144 = vrot.lane.b32.xlu0 %v87, 2
    %v145 = vpop.permute.xlu0 %144
    %146 = vrot.lane.b32.xlu0 %v88, 2
    %v147 = vpop.permute.xlu0 %146
    %148 = vrot.lane.b32.xlu0 %v89, 2
    %v149 = vpop.permute.xlu0 %148
    %v154 = vsub.f32 %v86, %v143
    %v155 = vsub.f32 %v87, %v145
    %v156 = vsub.f32 %v88, %v147
    %v157 = vsub.f32 %v89, %v149
    %v158 = vadd.f32 %v134, %v154
    %v159 = vadd.f32 %v135, %v155
    %v160 = vadd.f32 %v136, %v156
    %v161 = vadd.f32 %v137, %v157
    %v162 = vsub.f32 %v86, %v78
    %v163 = vsub.f32 %v87, %v79
    %v164 = vsub.f32 %v88, %v80
    %v165 = vsub.f32 %v89, %v81
    %v166 = vmul.f32 %v162, 2.0
    %v167 = vmul.f32 %v163, 2.0
    %v168 = vmul.f32 %v164, 2.0
    %v169 = vmul.f32 %v165, 2.0
    %174 = vrot.lane.b32.xlu0 %v166, 127
    %v175 = vpop.permute.xlu0 %174
    %176 = vrot.lane.b32.xlu0 %v167, 127
    %v177 = vpop.permute.xlu0 %176
    %178 = vrot.lane.b32.xlu0 %v168, 127
    %v179 = vpop.permute.xlu0 %178
    %180 = vrot.lane.b32.xlu0 %v169, 127
    %v181 = vpop.permute.xlu0 %180
    %v186 = vadd.f32 %v162, %v175
    %v187 = vadd.f32 %v163, %v177
    %v188 = vadd.f32 %v164, %v179
    %v189 = vadd.f32 %v165, %v181
    %194 = vrot.lane.b32.xlu0 %v162, 126
    %v195 = vpop.permute.xlu0 %194
    %196 = vrot.lane.b32.xlu0 %v163, 126
    %v197 = vpop.permute.xlu0 %196
    %198 = vrot.lane.b32.xlu0 %v164, 126
    %v199 = vpop.permute.xlu0 %198
    %200 = vrot.lane.b32.xlu0 %v165, 126
    %v201 = vpop.permute.xlu0 %200
    %v206 = vadd.f32 %v186, %v195
    %v207 = vadd.f32 %v187, %v197
    %v208 = vadd.f32 %v188, %v199
    %v209 = vadd.f32 %v189, %v201
    %v210 = vmul.f32 %v158, %v158
    %v211 = vmul.f32 %v159, %v159
    %v212 = vmul.f32 %v160, %v160
    %v213 = vmul.f32 %v161, %v161
    %v214 = vmul.f32 %v206, %v206
    %v215 = vmul.f32 %v207, %v207
    %v216 = vmul.f32 %v208, %v208
    %v217 = vmul.f32 %v209, %v209
    %222 = vrot.lane.b32.xlu0 %v214, 2
    %v223 = vpop.permute.xlu0 %222
    %224 = vrot.lane.b32.xlu0 %v215, 2
    %v225 = vpop.permute.xlu0 %224
    %226 = vrot.lane.b32.xlu0 %v216, 2
    %v227 = vpop.permute.xlu0 %226
    %228 = vrot.lane.b32.xlu0 %v217, 2
    %v229 = vpop.permute.xlu0 %228
    %v234 = vadd.f32 %v210, %v223
    %v235 = vadd.f32 %v211, %v225
    %v236 = vadd.f32 %v212, %v227
    %v237 = vadd.f32 %v213, %v229
    %v238 = vrsqrt.pop %v234
    %v239 = vmul.f32 %v238, %v234
    %v240 = vmul.f32 %v239, %v238
    %v241 = vmul.f32 0.5, %v240
    %v242 = vsub.f32 1.5, %v241
    %v243 = vmul.f32 %v238, %v242
    %v244 = vmul.f32 %v234, %v243
    %vm245 = vcmp.eq.f32.partialorder %v234, inf
    %v246 = vsel %vm245, %v234, %v244
    %vm247 = vcmp.eq.f32.partialorder %v234, 0.0
    %v248 = vand.u32 %v234, 2147483648
    %v249 = vsel %vm247, %v248, %v246
    %v250 = vrsqrt.pop %v235
    %v251 = vmul.f32 %v250, %v235
    %v252 = vmul.f32 %v251, %v250
    %v253 = vmul.f32 0.5, %v252
    %v254 = vsub.f32 1.5, %v253
    %v255 = vmul.f32 %v250, %v254
    %v256 = vmul.f32 %v235, %v255
    %vm257 = vcmp.eq.f32.partialorder %v235, inf
    %v258 = vsel %vm257, %v235, %v256
    %vm259 = vcmp.eq.f32.partialorder %v235, 0.0
    %v260 = vand.u32 %v235, 2147483648
    %v261 = vsel %vm259, %v260, %v258
    %v262 = vrsqrt.pop %v236
    %v263 = vmul.f32 %v262, %v236
    %v264 = vmul.f32 %v263, %v262
    %v265 = vmul.f32 0.5, %v264
    %v266 = vsub.f32 1.5, %v265
    %v267 = vmul.f32 %v262, %v266
    %v268 = vmul.f32 %v236, %v267
    %vm269 = vcmp.eq.f32.partialorder %v236, inf
    %v270 = vsel %vm269, %v236, %v268
    %vm271 = vcmp.eq.f32.partialorder %v236, 0.0
    %v272 = vand.u32 %v236, 2147483648
    %v273 = vsel %vm271, %v272, %v270
    %v274 = vrsqrt.pop %v237
    %v275 = vmul.f32 %v274, %v237
    %v276 = vmul.f32 %v275, %v274
    %v277 = vmul.f32 0.5, %v276
    %v278 = vsub.f32 1.5, %v277
    %v279 = vmul.f32 %v274, %v278
    %v280 = vmul.f32 %v237, %v279
    %vm281 = vcmp.eq.f32.partialorder %v237, inf
    %v282 = vsel %vm281, %v237, %v280
    %vm283 = vcmp.eq.f32.partialorder %v237, 0.0
    %v284 = vand.u32 %v237, 2147483648
    %v285 = vsel %vm283, %v284, %v282
    %290 = vrot.lane.b32.xlu0 %v249, 126
    %v291 = vpop.permute.xlu0 %290
    %292 = vrot.lane.b32.xlu0 %v261, 126
    %v293 = vpop.permute.xlu0 %292
    %294 = vrot.lane.b32.xlu0 %v273, 126
    %v295 = vpop.permute.xlu0 %294
    %296 = vrot.lane.b32.xlu0 %v285, 126
    %v297 = vpop.permute.xlu0 %296
    %vm302 = vcmask 130048
    %303 = vst.msk [vmem:[#allocation6] sm:$0xff] %vm302, %v291
    %304 = vst.msk [vmem:[#allocation6 + $0x8] sm:$0xff] %vm302, %v293
    %305 = vst.msk [vmem:[#allocation6 + $0x10] sm:$0xff] %vm302, %v295
    %306 = vst.msk [vmem:[#allocation6 + $0x18] sm:$0xff] %vm302, %v297
    // Predicated region
    $region10: #{tpu_custom_call.1} parent=1 // pred_check
      _
    $region11: #{tpu_custom_call.1} parent=1 // pred_check_branch
      %308 = sbr.rel (0) target = $region13
    $region12: #{tpu_custom_call.1} parent=1 // pred_region
      %310 = vsyncadd [#allocation5], 0
      %s311 = sshll.u32 [#allocation6], 4
      %s312 = int_to_ptr.vmem [resolvable:$true] %s311
      %s313 = sshll.u32 %s1, 4
      %s314 = int_to_ptr.hbm [resolvable:$true] %s313
      %319 = dma.vmem_to_hbm [thread:$0]  %s312, 512, %s314, [#allocation5], 128, 128, 8
    $region13: #{tpu_custom_call.1} parent=1 // pred_fallthru
      _
    // Predicated region
    $region14: #{tpu_custom_call.1} parent=1 // pred_check
      _
    $region15: #{tpu_custom_call.1} parent=1 // pred_check_branch
      %321 = sbr.rel (0) target = $region17
    $region16: #{tpu_custom_call.1} parent=1 // pred_region
      %323 = dma.done [#allocation5], 512
    $region17: #{tpu_custom_call.1} parent=1 // pred_fallthru
      _
    %324 = vsyncpa [#allocation4], 1
    %325 = vsyncpa [#allocation5], 1

</llo_original>
